<compile_context>
chip_gen: v6e
topology: v6e:2x2x1
jax: 0.10.0
libtpu: 0.0.40
codegen_flags: <defaults>
</compile_context>

<pallas_src>
import functools

import jax
import jax.numpy as jnp
from jax.experimental import pallas as pl
from jax.experimental.pallas import tpu as pltpu


# Approximate number of live (TB, C) f32 temporaries inside the kernel
# (s, t, s_shift, exp chains, tt_exp, cols iota) on top of the streamed tiles.
_F32_WORKING_SET_TEMPS = 6


def _round_up(x, m):
    return ((x + m - 1) // m) * m


def _vmem_limit_bytes():
    """Scoped VMEM limit ~= 75% of physical per-TC VMEM (per-generation)."""
    cap = 64 * 1024 * 1024  # conservative fallback (v7x per-TC physical)
    try:
        info = pltpu.get_tpu_info()
        cap = int(getattr(info, "vmem_capacity_bytes", cap))
    except Exception:
        pass
    limit = (cap * 3) // 4
    return int(max(16 * 1024 * 1024, min(limit, 100 * 1024 * 1024)))


def _choose_tb(batch, num_classes, itemsize, vmem_limit):
    """Largest batch tile (multiple of 8) whose streamed buffers + in-kernel
    f32 working set fit in the scoped VMEM budget, with >= 2 grid steps when
    the batch allows (megacore distribution on v7x)."""
    budget = int(vmem_limit * 0.8)
    bytes_per_row = num_classes * (2 * 2 * itemsize          # 2 streams x 2 bufs
                                   + _F32_WORKING_SET_TEMPS * 4)
    tb = budget // max(bytes_per_row, 1)
    tb = int(max(8, min(tb, 1024)))
    tb -= tb % 8

    b_pad = _round_up(batch, 8)
    if b_pad >= 16:
        half = (b_pad // 2) - ((b_pad // 2) % 8)   # force >= 2 grid steps
        tb = min(tb, max(half, 8))
    else:
        tb = min(tb, b_pad)
    return max(tb, 8)


def _distill_tile_kernel(s_ref, t_ref, lab_ref, out_ref, *, temperature, batch):
    """One batch tile: emit [hard NLL partial sum, KL partial sum] (unscaled)."""
    s = s_ref[...].astype(jnp.float32)            # (TB, C) student logits
    t = t_ref[...].astype(jnp.float32)            # (TB, C) teacher logits
    lab = lab_ref[...]                            # (TB, 1) int32 labels
    tb, c = s.shape

    # Rows of a partial last tile beyond the real batch hold unspecified data:
    # discard them with select (NaN/Inf safe), not a float multiply.
    row_ids = (jax.lax.broadcasted_iota(jnp.int32, (tb, 1), 0)
               + pl.program_id(0) * tb)
    valid = row_ids < batch                                        # (TB, 1) bool

    cols = jax.lax.broadcasted_iota(jnp.int32, (tb, c), 1)
    label_mask = cols == lab                                       # (TB, C) bool

    inv_t = 1.0 / float(temperature)

    # ---- hard loss: per-row NLL (s_max cancels; gather from s_shift) ------
    s_max = jnp.max(s, axis=1, keepdims=True)
    s_shift = s - s_max
    s_lse = jnp.log(jnp.sum(jnp.exp(s_shift), axis=1, keepdims=True))
    label_shift = jnp.sum(jnp.where(label_mask, s_shift, 0.0),
                          axis=1, keepdims=True)
    nll = s_lse - label_shift                                      # (TB, 1)
    hard_partial = jnp.sum(jnp.where(valid, nll, 0.0))

    # ---- soft loss: KL(teacher || student) at temperature T ---------------
    # max(s/T) == max(s)/T for T > 0, so reuse the student shift (no 2nd max).
    ss_shift = s_shift * inv_t
    ss_lse = jnp.log(jnp.sum(jnp.exp(ss_shift), axis=1, keepdims=True))

    tt = t * inv_t
    tt_max = jnp.max(tt, axis=1, keepdims=True)
    tt_shift = tt - tt_max
    tt_exp = jnp.exp(tt_shift)
    tt_sum = jnp.sum(tt_exp, axis=1, keepdims=True)
    log_tt_sum = jnp.log(tt_sum)

    # sum_j p_t (log p_t - log p_s)
    #   = [sum_j tt_exp * (tt_shift - ss_shift)] / tt_sum + (ss_lse - log_tt_sum)
    inner = jnp.sum(tt_exp * (tt_shift - ss_shift), axis=1, keepdims=True)
    kl_row = inner * pl.reciprocal(tt_sum, approx=False) + (ss_lse - log_tt_sum)
    kl_partial = jnp.sum(jnp.where(valid, kl_row, 0.0))

    # ---- lane-dense per-tile partials: lane 0 = hard, lane 1 = kl ---------
    lanes = jax.lax.broadcasted_iota(jnp.int32, out_ref.shape, 2)  # (1, 8, 128)
    out_ref[...] = (jnp.where(lanes == 0, hard_partial, 0.0)
                    + jnp.where(lanes == 1, kl_partial, 0.0))


def distillation_loss(student_logits, teacher_logits, labels,
                      alpha=0.5, temperature=2.0, tb=None, stream_bf16=False):
    """student_logits, teacher_logits: (B, C) float (f32 or bf16); labels: (B,) int.

    stream_bf16=True casts f32 logits to bf16 at the kernel boundary (fast
    path: halves HBM bytes on the mem-bound v5e/v6e path; math stays f32).
    """
    B, C = student_logits.shape

    if stream_bf16 and student_logits.dtype == jnp.float32:
        student_logits = student_logits.astype(jnp.bfloat16)
        teacher_logits = teacher_logits.astype(jnp.bfloat16)
    itemsize = jnp.dtype(student_logits.dtype).itemsize

    vmem_limit = _vmem_limit_bytes()
    if tb is None:
        tb = _choose_tb(B, C, itemsize, vmem_limit)
    tb = max(8, tb - (tb % 8))

    num_tiles = pl.cdiv(B, tb)   # last block may be partial; kernel masks it
    labels_2d = labels.astype(jnp.int32).reshape(B, 1)

    kernel = functools.partial(
        _distill_tile_kernel, temperature=float(temperature), batch=B)

    partials = pl.pallas_call(
        kernel,
        out_shape=jax.ShapeDtypeStruct((num_tiles, 8, 128), jnp.float32),
        grid=(num_tiles,),
        in_specs=[
            pl.BlockSpec((tb, C), lambda i: (i, 0)),   # student tile (VMEM)
            pl.BlockSpec((tb, C), lambda i: (i, 0)),   # teacher tile (VMEM)
            pl.BlockSpec((tb, 1), lambda i: (i, 0)),   # labels tile  (VMEM)
        ],
        out_specs=pl.BlockSpec((1, 8, 128), lambda i: (i, 0, 0)),
        compiler_params=pltpu.CompilerParams(
            dimension_semantics=("parallel",),         # both TCs on v7x
            vmem_limit_bytes=vmem_limit),
    )(student_logits, teacher_logits, labels_2d)

    # Tiny final reduction + blend in plain JAX.
    hard_sum = jnp.sum(partials[:, 0, 0])
    kl_sum = jnp.sum(partials[:, 0, 1])
    inv_b = 1.0 / float(B)
    t = float(temperature)
    hard_loss = hard_sum * inv_b
    soft_loss = kl_sum * inv_b * (t * t)
    return alpha * hard_loss + (1.0 - alpha) * soft_loss


def _reference(student_logits, teacher_logits, labels, alpha=0.5, temperature=2.0):
    # pure-JAX reference for sanity checking
    s = student_logits.astype(jnp.float32)
    t = teacher_logits.astype(jnp.float32)
    log_probs = jax.nn.log_softmax(s, axis=1)
    hard = -jnp.mean(jnp.take_along_axis(log_probs, labels[:, None], axis=1))
    log_ps = jax.nn.log_softmax(s / temperature, axis=1)
    pt = jax.nn.softmax(t / temperature, axis=1)
    kl = jnp.sum(pt * (jnp.log(pt) - log_ps)) / s.shape[0]
    soft = kl * temperature ** 2
    return alpha * hard + (1.0 - alpha) * soft


if __name__ == "__main__":
    key = jax.random.PRNGKey(0)
    k1, k2, k3 = jax.random.split(key, 3)

    B, C = 12, 16  # small, ragged batch: 2 grid steps, partial (masked) last block
    student = jax.random.normal(k1, (B, C), dtype=jnp.float32)
    teacher = jax.random.normal(k2, (B, C), dtype=jnp.float32)
    labels = jax.random.randint(k3, (B,), 0, C, dtype=jnp.int32)

    # explicit tile: exercises the partial-last-block masking path (no pad)
    loss = distillation_loss(student, teacher, labels,
                             alpha=0.5, temperature=2.0, tb=8)
    loss = jax.block_until_ready(loss)
    ref = _reference(student, teacher, labels, alpha=0.5, temperature=2.0)
    assert jnp.allclose(loss, ref, rtol=1e-5, atol=1e-5), (loss, ref)

    # default tile selection + bf16 streaming path (math stays f32 in-kernel)
    loss_bf16 = distillation_loss(student.astype(jnp.bfloat16),
                                  teacher.astype(jnp.bfloat16), labels,
                                  alpha=0.5, temperature=2.0)
    loss_bf16 = jax.block_until_ready(loss_bf16)
    ref_bf16 = _reference(student.astype(jnp.bfloat16),
                          teacher.astype(jnp.bfloat16), labels,
                          alpha=0.5, temperature=2.0)
    assert jnp.allclose(loss_bf16, ref_bf16, rtol=2e-2, atol=2e-2), (loss_bf16, ref_bf16)

    # f32 caller, bf16 streaming fast path
    loss_fast = distillation_loss(student, teacher, labels,
                                  alpha=0.5, temperature=2.0, stream_bf16=True)
    loss_fast = jax.block_until_ready(loss_fast)
    assert jnp.allclose(loss_fast, ref, rtol=3e-2, atol=3e-2), (loss_fast, ref)

    print("KERNEL_OK")
</pallas_src>

<mosaic_0001>
module attributes {stable_mosaic.version = 11 : i64} {
  func.func @_distill_tile_kernel(%arg0: i32, %arg1: memref<8x16xf32, #tpu.memory_space<vmem>>, %arg2: memref<8x16xf32, #tpu.memory_space<vmem>>, %arg3: memref<8x1xi32, #tpu.memory_space<vmem>>, %arg4: memref<1x8x128xf32, #tpu.memory_space<vmem>>) attributes {dimension_semantics = [#tpu.dimension_semantics<parallel>], iteration_bounds = array<i64: 2>, scalar_prefetch = 0 : i64, scratch_operands = 0 : i64, tpu.core_type = #tpu.core_type<tc>, window_params = [{transform_indices = @transform_0, window_bounds = array<i64: 8, 16>}, {transform_indices = @transform_1, window_bounds = array<i64: 8, 16>}, {transform_indices = @transform_2, window_bounds = array<i64: 8, 1>}, {transform_indices = @transform_3, window_bounds = array<i64: 1, 8, 128>}]} {
    %c0 = arith.constant 0 : index
    %c0_0 = arith.constant 0 : index
    %0 = vector.load %arg1[%c0, %c0_0] : memref<8x16xf32, #tpu.memory_space<vmem>>, vector<8x16xf32>
    %c0_1 = arith.constant 0 : index
    %c0_2 = arith.constant 0 : index
    %1 = vector.load %arg2[%c0_1, %c0_2] : memref<8x16xf32, #tpu.memory_space<vmem>>, vector<8x16xf32>
    %c0_3 = arith.constant 0 : index
    %c0_4 = arith.constant 0 : index
    %2 = vector.load %arg3[%c0_3, %c0_4] : memref<8x1xi32, #tpu.memory_space<vmem>>, vector<8x1xi32>
    %3 = tpu.iota {dimensions = array<i32: 0>} : vector<8x1xi32>
    %c8_i32 = arith.constant 8 : i32
    %4 = arith.muli %arg0, %c8_i32 : i32
    %5 = vector.broadcast %4 : i32 to vector<8x1xi32>
    %6 = arith.addi %3, %5 : vector<8x1xi32>
    %c12_i32 = arith.constant 12 : i32
    %7 = vector.broadcast %c12_i32 : i32 to vector<8x1xi32>
    %8 = arith.cmpi slt, %6, %7 : vector<8x1xi32>
    %9 = tpu.iota {dimensions = array<i32: 1>} : vector<8x16xi32>
    %10 = vector.broadcast %2 : vector<8x1xi32> to vector<8x16xi32>
    %11 = arith.cmpi eq, %9, %10 : vector<8x16xi32>
    %cst = arith.constant dense<0xFF800000> : vector<8xf32>
    %12 = vector.multi_reduction <maximumf>, %0, %cst [1] : vector<8x16xf32> to vector<8xf32>
    %13 = vector.shape_cast %12 : vector<8xf32> to vector<8x1xf32>
    %14 = vector.broadcast %13 : vector<8x1xf32> to vector<8x16xf32>
    %15 = arith.subf %0, %14 : vector<8x16xf32>
    %16 = math.exp %15 : vector<8x16xf32>
    %cst_5 = arith.constant dense<0.000000e+00> : vector<8xf32>
    %17 = vector.multi_reduction <add>, %16, %cst_5 [1] : vector<8x16xf32> to vector<8xf32>
    %18 = vector.shape_cast %17 : vector<8xf32> to vector<8x1xf32>
    %19 = math.log %18 : vector<8x1xf32>
    %cst_6 = arith.constant 0.000000e+00 : f32
    %20 = vector.broadcast %cst_6 : f32 to vector<8x16xf32>
    %21 = arith.select %11, %15, %20 : vector<8x16xi1>, vector<8x16xf32>
    %cst_7 = arith.constant dense<0.000000e+00> : vector<8xf32>
    %22 = vector.multi_reduction <add>, %21, %cst_7 [1] : vector<8x16xf32> to vector<8xf32>
    %23 = vector.shape_cast %22 : vector<8xf32> to vector<8x1xf32>
    %24 = arith.subf %19, %23 : vector<8x1xf32>
    %cst_8 = arith.constant 0.000000e+00 : f32
    %25 = vector.broadcast %cst_8 : f32 to vector<8x1xf32>
    %26 = arith.select %8, %24, %25 : vector<8x1xi1>, vector<8x1xf32>
    %27 = vector.shape_cast %26 : vector<8x1xf32> to vector<1x8x1xf32>
    %cst_9 = arith.constant dense<0.000000e+00> : vector<1xf32>
    %28 = vector.multi_reduction <add>, %27, %cst_9 [1, 2] : vector<1x8x1xf32> to vector<1xf32>
    %29 = vector.shape_cast %28 : vector<1xf32> to vector<1x1x1xf32>
    %30 = vector.extract %29[0, 0, 0] : f32 from vector<1x1x1xf32>
    %cst_10 = arith.constant 5.000000e-01 : f32
    %31 = vector.broadcast %cst_10 : f32 to vector<8x16xf32>
    %32 = arith.mulf %15, %31 : vector<8x16xf32>
    %33 = math.exp %32 : vector<8x16xf32>
    %cst_11 = arith.constant dense<0.000000e+00> : vector<8xf32>
    %34 = vector.multi_reduction <add>, %33, %cst_11 [1] : vector<8x16xf32> to vector<8xf32>
    %35 = vector.shape_cast %34 : vector<8xf32> to vector<8x1xf32>
    %36 = math.log %35 : vector<8x1xf32>
    %cst_12 = arith.constant 5.000000e-01 : f32
    %37 = vector.broadcast %cst_12 : f32 to vector<8x16xf32>
    %38 = arith.mulf %1, %37 : vector<8x16xf32>
    %cst_13 = arith.constant dense<0xFF800000> : vector<8xf32>
    %39 = vector.multi_reduction <maximumf>, %38, %cst_13 [1] : vector<8x16xf32> to vector<8xf32>
    %40 = vector.shape_cast %39 : vector<8xf32> to vector<8x1xf32>
    %41 = vector.broadcast %40 : vector<8x1xf32> to vector<8x16xf32>
    %42 = arith.subf %38, %41 : vector<8x16xf32>
    %43 = math.exp %42 : vector<8x16xf32>
    %cst_14 = arith.constant dense<0.000000e+00> : vector<8xf32>
    %44 = vector.multi_reduction <add>, %43, %cst_14 [1] : vector<8x16xf32> to vector<8xf32>
    %45 = vector.shape_cast %44 : vector<8xf32> to vector<8x1xf32>
    %46 = math.log %45 : vector<8x1xf32>
    %47 = arith.subf %42, %32 : vector<8x16xf32>
    %48 = arith.mulf %43, %47 : vector<8x16xf32>
    %cst_15 = arith.constant dense<0.000000e+00> : vector<8xf32>
    %49 = vector.multi_reduction <add>, %48, %cst_15 [1] : vector<8x16xf32> to vector<8xf32>
    %50 = vector.shape_cast %49 : vector<8xf32> to vector<8x1xf32>
    %51 = tpu.reciprocal %45 : vector<8x1xf32> -> vector<8x1xf32>
    %52 = arith.mulf %50, %51 : vector<8x1xf32>
    %53 = arith.subf %36, %46 : vector<8x1xf32>
    %54 = arith.addf %52, %53 : vector<8x1xf32>
    %cst_16 = arith.constant 0.000000e+00 : f32
    %55 = vector.broadcast %cst_16 : f32 to vector<8x1xf32>
    %56 = arith.select %8, %54, %55 : vector<8x1xi1>, vector<8x1xf32>
    %57 = vector.shape_cast %56 : vector<8x1xf32> to vector<1x8x1xf32>
    %cst_17 = arith.constant dense<0.000000e+00> : vector<1xf32>
    %58 = vector.multi_reduction <add>, %57, %cst_17 [1, 2] : vector<1x8x1xf32> to vector<1xf32>
    %59 = vector.shape_cast %58 : vector<1xf32> to vector<1x1x1xf32>
    %60 = vector.extract %59[0, 0, 0] : f32 from vector<1x1x1xf32>
    %61 = tpu.iota {dimensions = array<i32: 2>} : vector<1x8x128xi32>
    %c0_i32 = arith.constant 0 : i32
    %62 = vector.broadcast %c0_i32 : i32 to vector<1x8x128xi32>
    %63 = arith.cmpi eq, %61, %62 : vector<1x8x128xi32>
    %cst_18 = arith.constant 0.000000e+00 : f32
    %64 = vector.broadcast %30 : f32 to vector<1x8x128xf32>
    %65 = vector.broadcast %cst_18 : f32 to vector<1x8x128xf32>
    %66 = arith.select %63, %64, %65 : vector<1x8x128xi1>, vector<1x8x128xf32>
    %c1_i32 = arith.constant 1 : i32
    %67 = vector.broadcast %c1_i32 : i32 to vector<1x8x128xi32>
    %68 = arith.cmpi eq, %61, %67 : vector<1x8x128xi32>
    %cst_19 = arith.constant 0.000000e+00 : f32
    %69 = vector.broadcast %60 : f32 to vector<1x8x128xf32>
    %70 = vector.broadcast %cst_19 : f32 to vector<1x8x128xf32>
    %71 = arith.select %68, %69, %70 : vector<1x8x128xi1>, vector<1x8x128xf32>
    %72 = arith.addf %66, %71 : vector<1x8x128xf32>
    %c0_20 = arith.constant 0 : index
    %c0_21 = arith.constant 0 : index
    %c0_22 = arith.constant 0 : index
    %73 = vector.load %arg4[%c0_20, %c0_21, %c0_22] : memref<1x8x128xf32, #tpu.memory_space<vmem>>, vector<1x8x128xf32>
    tpu.vector_store %arg4[%c0_20, %c0_21, %c0_22], %72 {strides = array<i32>} : memref<1x8x128xf32, #tpu.memory_space<vmem>>, vector<1x8x128xf32>,
    return
  }
  func.func @transform_0(%arg0: i32) -> (i32, i32) {
    %c0_i32 = arith.constant 0 : i32
    %c0_i32_0 = arith.constant 0 : i32
    return %arg0, %c0_i32 : i32, i32
  }
  func.func @transform_1(%arg0: i32) -> (i32, i32) {
    %c0_i32 = arith.constant 0 : i32
    %c0_i32_0 = arith.constant 0 : i32
    return %arg0, %c0_i32 : i32, i32
  }
  func.func @transform_2(%arg0: i32) -> (i32, i32) {
    %c0_i32 = arith.constant 0 : i32
    %c0_i32_0 = arith.constant 0 : i32
    return %arg0, %c0_i32 : i32, i32
  }
  func.func @transform_3(%arg0: i32) -> (i32, i32, i32) {
    %c0_i32 = arith.constant 0 : i32
    %c0_i32_0 = arith.constant 0 : i32
    %c0_i32_1 = arith.constant 0 : i32
    return %arg0, %c0_i32, %c0_i32_0 : i32, i32, i32
  }
}

</mosaic_0001>

<llo_original>
// kernel: tpu_custom_call.1
$region0: #{tpu_custom_call.1}
  #allocation0 [shape = 'u32[]', space=smem, size = 0x4, offset = 0x4, fixed_abs, tag = 'smem constant byte address 0x4 - core index']
  #allocation1 [shape = 'u32[144,128]{1,0:T(1,128)}', space=vmem, size = 0x12000, scoped, tag = 'internal scratch']
  %s0 = inlined_call_operand.vmem [shape: f32[12,16], index: 0, kind: input, shape index: {}]
  %s1 = inlined_call_operand.hbm [shape: f32[12,16], index: 1, kind: input, shape index: {}]
  %s2 = inlined_call_operand.vmem [shape: s32[12,1], index: 2, kind: input, shape index: {}]
  %s3 = inlined_call_operand.hbm [shape: f32[2,8,128], index: 3, kind: output, shape index: {}]
  %s4 = sld [smem:[#allocation0]]
  $region49: #{tpu_custom_call.1} parent=0
    _
  %s6 = ssub.s32 1, %s4
  %s7 = scalar_select 0, %s6, %s4
  $region1: #{tpu_custom_call.1} parent=0
    #allocation2 [shape = 'u8[8192]{0}', space=vmem, size = 0x2000, scoped, tag = 'input window, operand 1']
    #allocation3 [shape = 's32[2]{0}', space=sflag, size = 0x8, scoped, tag = 'scoped memory for tpu_custom_call.1']
    #allocation4 [shape = 's32[2]{0}', space=sflag, size = 0x8, scoped, tag = 'scoped memory for tpu_custom_call.1']
    #allocation5 [shape = 'u8[8192]{0}', space=vmem, size = 0x2000, scoped, tag = 'output window, operand 0']
    %8 = vsyncpa [#allocation3], 0
    %s9 = scalar_lea.sflag [#allocation3], 1
    %10 = vsyncpa %s9, 0
    %11 = vsyncpa [#allocation4], 0
    %s12 = scalar_lea.sflag [#allocation4], 1
    %13 = vsyncpa %s12, 0
    loop: start=0, step=1, limit=4
    $region2: #{tpu_custom_call.1} parent=1 // loop_pre_header
      _
    $region3: #{tpu_custom_call.1} parent=1 // loop_header
      %s15 = sphi 0, %s19
      %p16 = scmp.ge.s32.totalorder %s15, 4
      %s25 = sphi 0, %s27
      %s28 = sphi 0, %s25
      %s29 = sphi 0, %s28
      %s45 = sphi 0, %s29
      %s51 = sphi 0, %s53
      %s54 = sphi 0, %s51
      %s55 = sphi 0, %s54
      %s71 = sphi 0, %s55
      %s77 = sphi 0, %s79
      %s80 = sphi 0, %s77
      %s81 = sphi 0, %s80
      %s97 = sphi 0, %s81
      %s103 = sphi 0, %s105
      %s106 = sphi 0, %s103
      %s107 = sphi 0, %s106
      %s123 = sphi 0, %s107
    $region4: #{tpu_custom_call.1} parent=1 // loop_header_branch
      %18 = sbr.rel (%p16) target = $region8
    $region5: #{tpu_custom_call.1} parent=1 // loop_body
      %s20 = ssub.s32 %s15, 1
      %s21 = ssub.s32 %s15, 2
      %s22 = sadd.s32 %s15, 1
      %s23 = ssub.s32 %s15, %s22
      %p24 = scmp.eq.s32.totalorder %s23, 0
      %s26 = sadd.s32 %s25, 1
      %s27 = scalar_select %p24, %s25, %s26
      %p30 = pneg %p24
      %p31 = scmp.eq.s32.totalorder %s15, 1
      %p32 = por %p30, %p31
      %p33 = scmp.ne.s32.totalorder %s25, %s28
      %p34 = scmp.eq.s32.totalorder %s15, 0
      %p35 = por %p33, %p34
      %p36 = scmp.ne.s32.totalorder %s25, %s28
      %p37 = scmp.eq.s32.totalorder %s20, 1
      %p38 = por %p36, %p37
      %p39 = scmp.ne.s32.totalorder %s28, %s29
      %p40 = scmp.eq.s32.totalorder %s20, 0
      %p41 = por %p39, %p40
      %p42 = scmp.ne.s32.totalorder %s28, %s29
      %p43 = scmp.eq.s32.totalorder %s21, 1
      %p44 = por %p42, %p43
      %p46 = scmp.ne.s32.totalorder %s29, %s45
      %p47 = scmp.eq.s32.totalorder %s21, 0
      %p48 = por %p46, %p47
      %s49 = ssub.s32 %s15, %s22
      %p50 = scmp.eq.s32.totalorder %s49, 0
      %s52 = sadd.s32 %s51, 1
      %s53 = scalar_select %p50, %s51, %s52
      %p56 = pneg %p50
      %p57 = scmp.eq.s32.totalorder %s15, 1
      %p58 = por %p56, %p57
      %p59 = scmp.ne.s32.totalorder %s51, %s54
      %p60 = scmp.eq.s32.totalorder %s15, 0
      %p61 = por %p59, %p60
      %p62 = scmp.ne.s32.totalorder %s51, %s54
      %p63 = scmp.eq.s32.totalorder %s20, 1
      %p64 = por %p62, %p63
      %p65 = scmp.ne.s32.totalorder %s54, %s55
      %p66 = scmp.eq.s32.totalorder %s20, 0
      %p67 = por %p65, %p66
      %p68 = scmp.ne.s32.totalorder %s54, %s55
      %p69 = scmp.eq.s32.totalorder %s21, 1
      %p70 = por %p68, %p69
      %p72 = scmp.ne.s32.totalorder %s55, %s71
      %p73 = scmp.eq.s32.totalorder %s21, 0
      %p74 = por %p72, %p73
      %s75 = ssub.s32 %s15, %s22
      %p76 = scmp.eq.s32.totalorder %s75, 0
      %s78 = sadd.s32 %s77, 1
      %s79 = scalar_select %p76, %s77, %s78
      %p82 = pneg %p76
      %p83 = scmp.eq.s32.totalorder %s15, 1
      %p84 = por %p82, %p83
      %p85 = scmp.ne.s32.totalorder %s77, %s80
      %p86 = scmp.eq.s32.totalorder %s15, 0
      %p87 = por %p85, %p86
      %p88 = scmp.ne.s32.totalorder %s77, %s80
      %p89 = scmp.eq.s32.totalorder %s20, 1
      %p90 = por %p88, %p89
      %p91 = scmp.ne.s32.totalorder %s80, %s81
      %p92 = scmp.eq.s32.totalorder %s20, 0
      %p93 = por %p91, %p92
      %p94 = scmp.ne.s32.totalorder %s80, %s81
      %p95 = scmp.eq.s32.totalorder %s21, 1
      %p96 = por %p94, %p95
      %p98 = scmp.ne.s32.totalorder %s81, %s97
      %p99 = scmp.eq.s32.totalorder %s21, 0
      %p100 = por %p98, %p99
      %s101 = ssub.s32 %s15, %s22
      %p102 = scmp.eq.s32.totalorder %s101, 0
      %s104 = sadd.s32 %s103, 1
      %s105 = scalar_select %p102, %s103, %s104
      %p108 = pneg %p102
      %p109 = scmp.eq.s32.totalorder %s15, 1
      %p110 = por %p108, %p109
      %p111 = scmp.ne.s32.totalorder %s103, %s106
      %p112 = scmp.eq.s32.totalorder %s15, 0
      %p113 = por %p111, %p112
      %p114 = scmp.ne.s32.totalorder %s103, %s106
      %p115 = scmp.eq.s32.totalorder %s20, 1
      %p116 = por %p114, %p115
      %p117 = scmp.ne.s32.totalorder %s106, %s107
      %p118 = scmp.eq.s32.totalorder %s20, 0
      %p119 = por %p117, %p118
      %p120 = scmp.ne.s32.totalorder %s106, %s107
      %p121 = scmp.eq.s32.totalorder %s21, 1
      %p122 = por %p120, %p121
      %p124 = scmp.ne.s32.totalorder %s107, %s123
      %p125 = scmp.eq.s32.totalorder %s21, 0
      %p126 = por %p124, %p125
      %p127 = scmp.le.s32.totalorder 1, %s15
      %p128 = scmp.lt.s32.totalorder %s15, 3
      %p129 = pnand %p127, %p128
      %p130 = pneg %p129
      // Predicated region
      $region9: #{tpu_custom_call.1} parent=5 // pred_check
        _
      $region10: #{tpu_custom_call.1} parent=5 // pred_check_branch
        %132 = sbr.rel (%p129) target = $region12
      $region11: #{tpu_custom_call.1} parent=5 // pred_region
        %s133 = ssub.s32 %s15, 1
      $region12: #{tpu_custom_call.1} parent=5 // pred_fallthru
        _
      %p134 = scmp.lt.s32.totalorder %s15, 2
      // Predicated region
      $region13: #{tpu_custom_call.1} parent=5 // pred_check
        %p135 = pneg %p134
      $region14: #{tpu_custom_call.1} parent=5 // pred_check_branch
        %137 = sbr.rel (%p135) target = $region16
      $region15: #{tpu_custom_call.1} parent=5 // pred_region
        // Predicated region
        $region17: #{tpu_custom_call.1} parent=15 // pred_check
          %p138 = pneg %p35
        $region18: #{tpu_custom_call.1} parent=15 // pred_check_branch
          %140 = sbr.rel (%p138) target = $region20
        $region19: #{tpu_custom_call.1} parent=15 // pred_region
          %p141 = scmp.lt.s32.totalorder %s15, 1
          %s142 = scalar_select %p141, %s15, 1
          %s143 = smul.addr %s142, 8
          %s144 = scalar_lea.vmem %s0, %s143
        $region20: #{tpu_custom_call.1} parent=15 // pred_fallthru
          _
        // Predicated region
        $region21: #{tpu_custom_call.1} parent=15 // pred_check
          %p145 = pneg %p61
        $region22: #{tpu_custom_call.1} parent=15 // pred_check_branch
          %147 = sbr.rel (%p145) target = $region24
        $region23: #{tpu_custom_call.1} parent=15 // pred_region
          %s148 = sand.u32 %s51, 1
          %s149 = scalar_lea.sflag [#allocation3], %s148
          %s150 = sand.u32 %s51, 1
          %s151 = smul.addr %s150, 8
          %s152 = scalar_lea.vmem [#allocation2], %s151
          %s154 = ssub.s32 128, 128
          %155 = vsyncadd %s149, %s154
          %s156 = smul.addr %s15, 128
          %s157 = scalar_lea.hbm %s1, %s156
          %s159 = sshll.u32 %s152, 4
          %s160 = int_to_ptr.vmem [resolvable:$true] %s159
          %162 = dma.hbm_to_vmem [thread:$0]  %s157, 128, %s160, %s149
        $region24: #{tpu_custom_call.1} parent=15 // pred_fallthru
          _
        // Predicated region
        $region25: #{tpu_custom_call.1} parent=15 // pred_check
          %p163 = pneg %p87
        $region26: #{tpu_custom_call.1} parent=15 // pred_check_branch
          %165 = sbr.rel (%p163) target = $region28
        $region27: #{tpu_custom_call.1} parent=15 // pred_region
          %p166 = scmp.lt.s32.totalorder %s15, 1
          %s167 = scalar_select %p166, %s15, 1
          %s168 = smul.addr %s167, 8
          %s169 = scalar_lea.vmem %s2, %s168
        $region28: #{tpu_custom_call.1} parent=15 // pred_fallthru
          _
      $region16: #{tpu_custom_call.1} parent=5 // pred_fallthru
        _
      %p170 = scmp.le.s32.totalorder 1, %s15
      %p171 = scmp.lt.s32.totalorder %s15, 3
      %p172 = pnand %p170, %p171
      %p173 = pneg %p172
      // Predicated region
      $region29: #{tpu_custom_call.1} parent=5 // pred_check
        _
      $region30: #{tpu_custom_call.1} parent=5 // pred_check_branch
        %175 = sbr.rel (%p172) target = $region32
      $region31: #{tpu_custom_call.1} parent=5 // pred_region
        %s176 = ssub.s32 %s15, 1
        %s177 = sand.u32 %s54, 1
        %s178 = scalar_lea.sflag [#allocation3], %s177
        %s179 = sand.u32 %s54, 1
        %s180 = smul.addr %s179, 8
        %s181 = scalar_lea.vmem [#allocation2], %s180
        // Predicated region
        $region33: #{tpu_custom_call.1} parent=31 // pred_check
          %p182 = pneg %p67
        $region34: #{tpu_custom_call.1} parent=31 // pred_check_branch
          %184 = sbr.rel (%p182) target = $region36
        $region35: #{tpu_custom_call.1} parent=31 // pred_region
          %185 = dma.done %s178, 128
        $region36: #{tpu_custom_call.1} parent=31 // pred_fallthru
          _
        %p186 = scmp.lt.s32.totalorder %s20, 1
        %s187 = scalar_select %p186, %s20, 1
        %s188 = smul.addr %s187, 8
        %s189 = scalar_lea.vmem %s0, %s188
        %p190 = pneg %p41
        %p191 = pneg %p38
        %s192 = sand.u32 %s54, 1
        %s193 = scalar_lea.sflag [#allocation3], %s192
        %s194 = sand.u32 %s54, 1
        %s195 = smul.addr %s194, 8
        %s196 = scalar_lea.vmem [#allocation2], %s195
        %p197 = pneg %p67
        %p198 = pneg %p64
        %p199 = scmp.lt.s32.totalorder %s20, 1
        %s200 = scalar_select %p199, %s20, 1
        %s201 = smul.addr %s200, 8
        %s202 = scalar_lea.vmem %s2, %s201
        %p203 = pneg %p93
        %p204 = pneg %p90
        %p205 = pneg %p119
        %p206 = pneg %p116
        %s207 = sand.u32 %s106, 1
        %s208 = scalar_lea.sflag [#allocation4], %s207
        %s209 = sand.u32 %s106, 1
        %s210 = smul.addr %s209, 8
        %s211 = scalar_lea.vmem [#allocation5], %s210
        %p212 = scmp.lt.s32.totalorder %s20, 1
        %s213 = scalar_select %p212, %s20, 1
        %s214 = smul.addr %s213, 8
        %s215 = scalar_lea.vmem %s0, %s214
        %p216 = scmp.lt.s32.totalorder %s20, 1
        %s217 = scalar_select %p216, %s20, 1
        %s218 = smul.addr %s217, 8
        %s219 = scalar_lea.vmem %s2, %s218
        %v220 = vld [vmem:[%s215] sm:$0xff]
        %v221 = vld [vmem:[%s181] sm:$0xff]
        %v222 = vld [vmem:[%s219] sm:$0xff]
        %v223 = vlaneseq
        %v224 = vshrl.u32 %v223, 7
        %s225 = smul.u32 %s20, 8
        %v226 = vstv %s225
        %v227 = vadd.s32 %v224, %v226
        %vm228 = vcmp.lt.s32.totalorder %v227, 12
        %v229 = vlaneseq
        %v230 = vand.u32 %v229, 127
        %231 = vset.pattern.permute.xlu0 0
        %232 = vperm.xlu0 %231, %v222
        %v233 = vpop.permute.xlu0 %232
        %vm234 = vcmp.eq.s32.totalorder %v230, %v233
        %vm235 = vcmask 130048
        %v236 = vsel %vm235, %v220, -inf
        %237 = vmax.xlane.f32.xlu0 %v236
        %v238 = vpop.xlane.xlu0 %237
        %v239 = vsub.f32 %v220, %v238
        %v240 = vmul.f32 %v239, 1.442695
        %v241 = vpow.pop %v240
        %v242 = vsel %vm235, %v241, 0.0
        %243 = vadd.xlane.f32.xlu0 %v242
        %v244 = vpop.xlane.xlu0 %243
        %v245 = vlog2.pop %v244
        %v246 = vmul.f32 %v245, 0.6931472
        %v247 = vsel %vm234, %v239, 0.0
        %v248 = vsel %vm235, %v247, 0.0
        %249 = vadd.xlane.f32.xlu0 %v248
        %v250 = vpop.xlane.xlu0 %249
        %v251 = vsub.f32 %v246, %v250
        %v252 = vsel %vm228, %v251, 0.0
        %vm253 = vcmask 7168
        %v254 = vsel %vm253, %v252, 0.0
        %255 = vadd.xlane.f32.xlu0 %v254
        %v256 = vpop.xlane.xlu0 %255
        %v257 = vrot.slane %v256, 4
        %v258 = vadd.f32 %v256, %v257
        %v259 = vrot.slane %v258, 2
        %v260 = vadd.f32 %v258, %v259
        %v261 = vrot.slane %v260, 1
        %v262 = vadd.f32 %v260, %v261
        %s263 = vtos %v262
        %v264 = vmul.f32 %v239, 0.5
        %v265 = vmul.f32 %v264, 1.442695
        %v266 = vpow.pop %v265
        %v267 = vsel %vm235, %v266, 0.0
        %268 = vadd.xlane.f32.xlu0 %v267
        %v269 = vpop.xlane.xlu0 %268
        %v270 = vlog2.pop %v269
        %v271 = vmul.f32 %v270, 0.6931472
        %v272 = vmul.f32 %v221, 0.5
        %v273 = vsel %vm235, %v272, -inf
        %274 = vmax.xlane.f32.xlu0 %v273
        %v275 = vpop.xlane.xlu0 %274
        %v276 = vsub.f32 %v272, %v275
        %v277 = vmul.f32 %v276, 1.442695
        %v278 = vpow.pop %v277
        %v279 = vsel %vm235, %v278, 0.0
        %280 = vadd.xlane.f32.xlu0 %v279
        %v281 = vpop.xlane.xlu0 %280
        %v282 = vlog2.pop %v281
        %v283 = vmul.f32 %v282, 0.6931472
        %v284 = vsub.f32 %v276, %v264
        %v285 = vmul.f32 %v278, %v284
        %v286 = vsel %vm235, %v285, 0.0
        %287 = vadd.xlane.f32.xlu0 %v286
        %v288 = vpop.xlane.xlu0 %287
        %v289 = vrcp.pop %v281
        %v290 = vmul.f32 %v288, %v289
        %v291 = vsub.f32 %v271, %v283
        %v292 = vadd.f32 %v290, %v291
        %v293 = vsel %vm228, %v292, 0.0
        %v294 = vsel %vm253, %v293, 0.0
        %295 = vadd.xlane.f32.xlu0 %v294
        %v296 = vpop.xlane.xlu0 %295
        %v297 = vrot.slane %v296, 4
        %v298 = vadd.f32 %v296, %v297
        %v299 = vrot.slane %v298, 2
        %v300 = vadd.f32 %v298, %v299
        %v301 = vrot.slane %v300, 1
        %v302 = vadd.f32 %v300, %v301
        %s303 = vtos %v302
        %vm304 = vcmp.eq.s32.totalorder %v230, 0
        %v305 = vstv %s263
        %v306 = vsel %vm304, %v305, 0.0
        %vm307 = vcmp.eq.s32.totalorder %v230, 1
        %v308 = vstv %s303
        %v309 = vsel %vm307, %v308, 0.0
        %v310 = vadd.f32 %v306, %v309
        %311 = vst [vmem:[%s211] sm:$0xff] %v310
        %s312 = sand.u32 %s106, 1
        %s313 = scalar_lea.sflag [#allocation4], %s312
        %s314 = sand.u32 %s106, 1
        %s315 = smul.addr %s314, 8
        %s316 = scalar_lea.vmem [#allocation5], %s315
        // Predicated region
        $region37: #{tpu_custom_call.1} parent=31 // pred_check
          %p317 = pneg %p116
        $region38: #{tpu_custom_call.1} parent=31 // pred_check_branch
          %319 = sbr.rel (%p317) target = $region40
        $region39: #{tpu_custom_call.1} parent=31 // pred_region
          %s321 = ssub.s32 128, 128
          %322 = vsyncadd %s313, %s321
          %s323 = smul.addr %s20, 128
          %s324 = scalar_lea.hbm %s3, %s323
          %s326 = sshll.u32 %s316, 4
          %s327 = int_to_ptr.vmem [resolvable:$true] %s326
          %329 = dma.vmem_to_hbm [thread:$0]  %s327, 128, %s324, %s313
        $region40: #{tpu_custom_call.1} parent=31 // pred_fallthru
          _
      $region32: #{tpu_custom_call.1} parent=5 // pred_fallthru
        _
      %p330 = scmp.le.s32.totalorder 2, %s15
      // Predicated region
      $region41: #{tpu_custom_call.1} parent=5 // pred_check
        %p331 = pneg %p330
      $region42: #{tpu_custom_call.1} parent=5 // pred_check_branch
        %333 = sbr.rel (%p331) target = $region44
      $region43: #{tpu_custom_call.1} parent=5 // pred_region
        %s334 = ssub.s32 %s15, 2
        // Predicated region
        $region45: #{tpu_custom_call.1} parent=43 // pred_check
          %p335 = pneg %p122
        $region46: #{tpu_custom_call.1} parent=43 // pred_check_branch
          %337 = sbr.rel (%p335) target = $region48
        $region47: #{tpu_custom_call.1} parent=43 // pred_region
          %s338 = sand.u32 %s107, 1
          %s339 = scalar_lea.sflag [#allocation4], %s338
          %s340 = sand.u32 %s107, 1
          %s341 = smul.addr %s340, 8
          %s342 = scalar_lea.vmem [#allocation5], %s341
          %343 = dma.done %s339, 128
        $region48: #{tpu_custom_call.1} parent=43 // pred_fallthru
          _
      $region44: #{tpu_custom_call.1} parent=5 // pred_fallthru
        _
    $region6: #{tpu_custom_call.1} parent=1 // loop_footer
      %s19 = sadd.s32 1, %s15
    $region7: #{tpu_custom_call.1} parent=1 // loop_footer_branch
      %14 = sbr.rel target = $region3
    $region8: #{tpu_custom_call.1} parent=1 // loop_exit
      _
    %344 = vsyncpa [#allocation3], 1
    %s345 = scalar_lea.sflag [#allocation3], 1
    %346 = vsyncpa %s345, 1
    %347 = vsyncpa [#allocation4], 1
    %s348 = scalar_lea.sflag [#allocation4], 1
    %349 = vsyncpa %s348, 1

</llo_original>
